<compile_context>
chip_gen: v7x
topology: tpu7x:2x2x1
jax: 0.10.0
libtpu: 0.0.40
codegen_flags: <defaults>
</compile_context>

<pallas_src>
import functools
import math

import jax
import jax.numpy as jnp
from jax import lax
from jax.experimental import pallas as pl
from jax.experimental.pallas import tpu as pltpu


_VMEM_LIMIT_BYTES = 32 * 1024 * 1024       # safe on v5e/v6e (128 MiB) and v7x (64 MiB)
_TARGET_BLOCK_BYTES = 4 * 1024 * 1024      # ~4x resident (double-buffered in+out) ~= 16 MiB


# ---------------------------------------------------------------------------
# Kernels
# ---------------------------------------------------------------------------

def _spec_aug_kernel_plain(t_bgn_ref, t_dist_ref, f_bgn_ref, f_dist_ref,
                           x_ref, o_ref, *,
                           time_stripes, freq_stripes, t_blk):
    """Plain layout.  Block = (C, t_blk, F); grid = (B, T // t_blk).

    t_*_ref / f_*_ref: SMEM 1-D int32, length B*stripes.
    """
    b = pl.program_id(0)
    tt = pl.program_id(1)
    _, tb, f = x_ref.shape

    # 1-D masks: per-stripe work is O(T) + O(F); combined once per tile.
    t_idx = tt * t_blk + lax.broadcasted_iota(jnp.int32, (tb, 1), 0)
    f_idx = lax.broadcasted_iota(jnp.int32, (1, f), 1)

    keep_t = jnp.ones((tb, 1), dtype=jnp.bool_)
    for s in range(time_stripes):
        bgn = t_bgn_ref[b * time_stripes + s]
        end = bgn + t_dist_ref[b * time_stripes + s]
        keep_t = keep_t & jnp.logical_not((t_idx >= bgn) & (t_idx < end))

    keep_f = jnp.ones((1, f), dtype=jnp.bool_)
    for s in range(freq_stripes):
        bgn = f_bgn_ref[b * freq_stripes + s]
        end = bgn + f_dist_ref[b * freq_stripes + s]
        keep_f = keep_f & jnp.logical_not((f_idx >= bgn) & (f_idx < end))

    x = x_ref[...]
    mask = (keep_t & keep_f).astype(x.dtype)       # (tb, f): one AND + one cast
    o_ref[...] = x * mask[None, :, :]              # single multiply per element


def _spec_aug_kernel_folded(t_bgn_ref, t_dist_ref, f_bgn_ref, f_dist_ref,
                            x_ref, toff_ref, fidx_ref, o_ref, *,
                            time_stripes, freq_stripes, g_blk, k):
    """Lane-dense folded layout.  Block = (C, g_blk, k*F); time folded into lanes.

    toff_ref[(0, l)] = l // F  (time offset inside a folded group of k rows)
    fidx_ref[(0, l)] = l %  F  (freq bin for lane l)
    """
    b = pl.program_id(0)
    tt = pl.program_id(1)
    _, gb, lanes = x_ref.shape

    row = lax.broadcasted_iota(jnp.int32, (gb, 1), 0)
    t_idx = (tt * g_blk + row) * k + toff_ref[...]   # (gb, lanes)
    f_idx = fidx_ref[...]                            # (1, lanes)

    keep = jnp.ones((gb, lanes), dtype=jnp.bool_)
    for s in range(time_stripes):
        bgn = t_bgn_ref[b * time_stripes + s]
        end = bgn + t_dist_ref[b * time_stripes + s]
        keep = keep & jnp.logical_not((t_idx >= bgn) & (t_idx < end))

    keep_f = jnp.ones((1, lanes), dtype=jnp.bool_)
    for s in range(freq_stripes):
        bgn = f_bgn_ref[b * freq_stripes + s]
        end = bgn + f_dist_ref[b * freq_stripes + s]
        keep_f = keep_f & jnp.logical_not((f_idx >= bgn) & (f_idx < end))

    x = x_ref[...]
    mask = (keep & keep_f).astype(x.dtype)
    o_ref[...] = x * mask[None, :, :]


# ---------------------------------------------------------------------------
# Wrapper
# ---------------------------------------------------------------------------

def _pick_row_tile(c, rows, lanes, itemsize, target_bytes=_TARGET_BLOCK_BYTES):
    """Largest row tile dividing `rows`, 8-aligned (or full extent), that fits."""
    def block_bytes(r):
        return c * r * lanes * itemsize
    if block_bytes(rows) <= target_bytes:
        return rows
    cands = [r for r in range(8, rows, 8) if rows % r == 0]
    fitting = [r for r in cands if block_bytes(r) <= target_bytes]
    if fitting:
        return max(fitting)
    return min(cands) if cands else rows


def _fold_factor(t, f):
    """Smallest k with (k*f) % 128 == 0 and t % k == 0; 1 if none / not needed."""
    if f % 128 == 0:
        return 1
    k = 128 // math.gcd(f, 128)
    return k if (k > 1 and t % k == 0) else 1


def _spec_augment_pallas(x, t_bgn, t_dist, f_bgn, f_dist):
    B, C, T, F = x.shape
    time_stripes = t_bgn.shape[1]
    freq_stripes = f_bgn.shape[1]

    # Flat 1-D scalar-prefetch arrays (1-D SMEM pads to next pow2, not [8,128]).
    t_bgn = t_bgn.reshape(-1).astype(jnp.int32)
    t_dist = t_dist.reshape(-1).astype(jnp.int32)
    f_bgn = f_bgn.reshape(-1).astype(jnp.int32)
    f_dist = f_dist.reshape(-1).astype(jnp.int32)

    itemsize = jnp.dtype(x.dtype).itemsize
    compiler_params = pltpu.CompilerParams(
        dimension_semantics=("parallel", "parallel"),
        vmem_limit_bytes=_VMEM_LIMIT_BYTES)

    k = _fold_factor(T, F)

    if k > 1:
        # Lane-dense path: fold k time rows into the lane axis (free reshape).
        lanes = k * F
        g_total = T // k
        g_blk = _pick_row_tile(C, g_total, lanes, itemsize)
        x_f = x.reshape(B, C, g_total, lanes)

        lane = jnp.arange(lanes, dtype=jnp.int32)
        toff = (lane // F).reshape(1, lanes)
        fidx = (lane % F).reshape(1, lanes)

        kernel = functools.partial(
            _spec_aug_kernel_folded, time_stripes=time_stripes,
            freq_stripes=freq_stripes, g_blk=g_blk, k=k)

        grid_spec = pltpu.PrefetchScalarGridSpec(
            num_scalar_prefetch=4,
            grid=(B, g_total // g_blk),
            in_specs=[
                pl.BlockSpec((None, C, g_blk, lanes),
                             lambda b, tt, *_: (b, 0, tt, 0)),
                pl.BlockSpec((1, lanes), lambda b, tt, *_: (0, 0)),
                pl.BlockSpec((1, lanes), lambda b, tt, *_: (0, 0)),
            ],
            out_specs=pl.BlockSpec((None, C, g_blk, lanes),
                                   lambda b, tt, *_: (b, 0, tt, 0)),
        )
        out = pl.pallas_call(
            kernel,
            out_shape=jax.ShapeDtypeStruct(x_f.shape, x.dtype),
            grid_spec=grid_spec,
            compiler_params=compiler_params,
        )(t_bgn, t_dist, f_bgn, f_dist, x_f, toff, fidx)
        return out.reshape(B, C, T, F)

    # Plain path (already lane-dense when F % 128 == 0, or un-foldable fallback).
    t_blk = _pick_row_tile(C, T, F, itemsize)
    kernel = functools.partial(
        _spec_aug_kernel_plain, time_stripes=time_stripes,
        freq_stripes=freq_stripes, t_blk=t_blk)
    grid_spec = pltpu.PrefetchScalarGridSpec(
        num_scalar_prefetch=4,
        grid=(B, T // t_blk),
        in_specs=[pl.BlockSpec((None, C, t_blk, F),
                               lambda b, tt, *_: (b, 0, tt, 0))],
        out_specs=pl.BlockSpec((None, C, t_blk, F),
                               lambda b, tt, *_: (b, 0, tt, 0)),
    )
    return pl.pallas_call(
        kernel,
        out_shape=jax.ShapeDtypeStruct(x.shape, x.dtype),
        grid_spec=grid_spec,
        compiler_params=compiler_params,
    )(t_bgn, t_dist, f_bgn, f_dist, x)


# ---------------------------------------------------------------------------
# Module
# ---------------------------------------------------------------------------

class SpecAugmentation:
    """JAX/Pallas port of the PyTorch SpecAugmentation module."""

    def __init__(self, time_drop_width, time_stripes_num,
                 freq_drop_width, freq_stripes_num):
        self.time_drop_width = time_drop_width
        self.time_stripes_num = time_stripes_num
        self.freq_drop_width = freq_drop_width
        self.freq_stripes_num = freq_stripes_num

    def _sample_stripes(self, key, batch, stripes_num, drop_width, total_width):
        """Matches torch.randint semantics (high exclusive)."""
        k1, k2 = jax.random.split(key)
        dist = jax.random.randint(
            k1, (batch, stripes_num), minval=0, maxval=drop_width,
            dtype=jnp.int32)
        # Guard: keep maxval >= 1 even if drop_width >= total_width.
        bgn = jax.random.randint(
            k2, (batch, stripes_num), minval=0,
            maxval=jnp.maximum(total_width - dist, 1), dtype=jnp.int32)
        return bgn, dist

    def __call__(self, x, key, training=True):
        if not training:
            return x
        B, C, T, F = x.shape
        kt, kf = jax.random.split(key)
        t_bgn, t_dist = self._sample_stripes(
            kt, B, self.time_stripes_num, self.time_drop_width, T)
        f_bgn, f_dist = self._sample_stripes(
            kf, B, self.freq_stripes_num, self.freq_drop_width, F)
        return _spec_augment_pallas(x, t_bgn, t_dist, f_bgn, f_dist)


# ---------------------------------------------------------------------------
# Pure-JAX reference + test
# ---------------------------------------------------------------------------

def _reference(x, t_bgn, t_dist, f_bgn, f_dist):
    B, C, T, F = x.shape
    t_idx = jnp.arange(T)
    f_idx = jnp.arange(F)
    keep = jnp.ones((B, T, F), dtype=bool)
    for s in range(t_bgn.shape[1]):
        m = (t_idx[None, :] >= t_bgn[:, s:s + 1]) & \
            (t_idx[None, :] < (t_bgn[:, s:s + 1] + t_dist[:, s:s + 1]))
        keep = keep & ~m[:, :, None]
    for s in range(f_bgn.shape[1]):
        m = (f_idx[None, :] >= f_bgn[:, s:s + 1]) & \
            (f_idx[None, :] < (f_bgn[:, s:s + 1] + f_dist[:, s:s + 1]))
        keep = keep & ~m[:, None, :]
    return jnp.where(keep[:, None, :, :], x, 0.0)


if __name__ == "__main__":
    key = jax.random.PRNGKey(0)
    k_x, k_aug, k_x2, k_aug2 = jax.random.split(key, 4)

    # Case 1: (2, 4, 16, 16) -> lane-dense folded path (16 freq bins fold x8 -> 128 lanes).
    B, C, T, F = 2, 4, 16, 16
    x = jax.random.normal(k_x, (B, C, T, F), dtype=jnp.float32)
    module = SpecAugmentation(time_drop_width=4, time_stripes_num=2,
                              freq_drop_width=4, freq_stripes_num=2)
    out = jax.block_until_ready(module(x, k_aug, training=True))

    kt, kf = jax.random.split(k_aug)
    t_bgn, t_dist = module._sample_stripes(kt, B, 2, 4, T)
    f_bgn, f_dist = module._sample_stripes(kf, B, 2, 4, F)
    ref = _reference(x, t_bgn, t_dist, f_bgn, f_dist)
    assert jnp.allclose(out, ref), "folded path mismatch vs reference"

    # Case 2: (2, 3, 10, 24) -> plain fallback path (no valid fold).
    B2, C2, T2, F2 = 2, 3, 10, 24
    x2 = jax.random.normal(k_x2, (B2, C2, T2, F2), dtype=jnp.float32)
    module2 = SpecAugmentation(time_drop_width=3, time_stripes_num=2,
                               freq_drop_width=5, freq_stripes_num=2)
    out2 = jax.block_until_ready(module2(x2, k_aug2, training=True))

    kt2, kf2 = jax.random.split(k_aug2)
    t_bgn2, t_dist2 = module2._sample_stripes(kt2, B2, 2, 3, T2)
    f_bgn2, f_dist2 = module2._sample_stripes(kf2, B2, 2, 5, F2)
    ref2 = _reference(x2, t_bgn2, t_dist2, f_bgn2, f_dist2)
    assert jnp.allclose(out2, ref2), "plain path mismatch vs reference"

    # Eval mode is identity.
    assert jnp.array_equal(module(x, k_aug, training=False), x)

    print("KERNEL_OK")
</pallas_src>

<mosaic_0001>
module attributes {stable_mosaic.version = 11 : i64} {
  func.func @_spec_aug_kernel_folded(%arg0: i32, %arg1: i32, %arg2: memref<4xi32, #tpu.memory_space<smem>>, %arg3: memref<4xi32, #tpu.memory_space<smem>>, %arg4: memref<4xi32, #tpu.memory_space<smem>>, %arg5: memref<4xi32, #tpu.memory_space<smem>>, %arg6: memref<1x4x2x128xf32, #tpu.memory_space<vmem>>, %arg7: memref<1x128xi32, #tpu.memory_space<vmem>>, %arg8: memref<1x128xi32, #tpu.memory_space<vmem>>, %arg9: memref<1x4x2x128xf32, #tpu.memory_space<vmem>>) attributes {dimension_semantics = [#tpu.dimension_semantics<parallel>, #tpu.dimension_semantics<parallel>], iteration_bounds = array<i64: 2, 1>, scalar_prefetch = 4 : i64, scratch_operands = 0 : i64, tpu.core_type = #tpu.core_type<tc>, window_params = [{transform_indices = @transform_0, window_bounds = array<i64: 1, 4, 2, 128>}, {pipeline_mode = #tpu.pipeline_mode<synchronous>, transform_indices = @transform_1, window_bounds = array<i64: 1, 128>}, {pipeline_mode = #tpu.pipeline_mode<synchronous>, transform_indices = @transform_2, window_bounds = array<i64: 1, 128>}, {transform_indices = @transform_3, window_bounds = array<i64: 1, 4, 2, 128>}]} {
    %0 = tpu.iota {dimensions = array<i32: 0>} : vector<2x1xi32>
    %c2_i32 = arith.constant 2 : i32
    %1 = arith.muli %arg1, %c2_i32 : i32
    %2 = vector.broadcast %1 : i32 to vector<2x1xi32>
    %3 = arith.addi %2, %0 : vector<2x1xi32>
    %c8_i32 = arith.constant 8 : i32
    %4 = vector.broadcast %c8_i32 : i32 to vector<2x1xi32>
    %5 = arith.muli %3, %4 : vector<2x1xi32>
    %c0 = arith.constant 0 : index
    %c0_0 = arith.constant 0 : index
    %6 = vector.load %arg7[%c0, %c0_0] : memref<1x128xi32, #tpu.memory_space<vmem>>, vector<1x128xi32>
    %7 = vector.broadcast %5 : vector<2x1xi32> to vector<2x128xi32>
    %8 = vector.broadcast %6 : vector<1x128xi32> to vector<2x128xi32>
    %9 = arith.addi %7, %8 : vector<2x128xi32>
    %c0_1 = arith.constant 0 : index
    %c0_2 = arith.constant 0 : index
    %10 = vector.load %arg8[%c0_1, %c0_2] : memref<1x128xi32, #tpu.memory_space<vmem>>, vector<1x128xi32>
    %true = arith.constant true
    %11 = vector.broadcast %true : i1 to vector<2x128xi1>
    %c2_i32_3 = arith.constant 2 : i32
    %12 = arith.muli %arg0, %c2_i32_3 : i32
    %c0_i32 = arith.constant 0 : i32
    %13 = arith.addi %12, %c0_i32 : i32
    %14 = arith.index_cast %13 : i32 to index
    %15 = memref.load %arg2[%14] : memref<4xi32, #tpu.memory_space<smem>>
    %c2_i32_4 = arith.constant 2 : i32
    %16 = arith.muli %arg0, %c2_i32_4 : i32
    %c0_i32_5 = arith.constant 0 : i32
    %17 = arith.addi %16, %c0_i32_5 : i32
    %18 = arith.index_cast %17 : i32 to index
    %19 = memref.load %arg3[%18] : memref<4xi32, #tpu.memory_space<smem>>
    %20 = arith.addi %15, %19 : i32
    %21 = vector.broadcast %15 : i32 to vector<2x128xi32>
    %22 = arith.cmpi sge, %9, %21 : vector<2x128xi32>
    %23 = vector.broadcast %20 : i32 to vector<2x128xi32>
    %24 = arith.cmpi slt, %9, %23 : vector<2x128xi32>
    %25 = arith.andi %22, %24 : vector<2x128xi1>
    %cst = arith.constant dense<true> : vector<2x128xi1>
    %26 = arith.xori %25, %cst : vector<2x128xi1>
    %27 = arith.andi %11, %26 : vector<2x128xi1>
    %c2_i32_6 = arith.constant 2 : i32
    %28 = arith.muli %arg0, %c2_i32_6 : i32
    %c1_i32 = arith.constant 1 : i32
    %29 = arith.addi %28, %c1_i32 : i32
    %30 = arith.index_cast %29 : i32 to index
    %31 = memref.load %arg2[%30] : memref<4xi32, #tpu.memory_space<smem>>
    %c2_i32_7 = arith.constant 2 : i32
    %32 = arith.muli %arg0, %c2_i32_7 : i32
    %c1_i32_8 = arith.constant 1 : i32
    %33 = arith.addi %32, %c1_i32_8 : i32
    %34 = arith.index_cast %33 : i32 to index
    %35 = memref.load %arg3[%34] : memref<4xi32, #tpu.memory_space<smem>>
    %36 = arith.addi %31, %35 : i32
    %37 = vector.broadcast %31 : i32 to vector<2x128xi32>
    %38 = arith.cmpi sge, %9, %37 : vector<2x128xi32>
    %39 = vector.broadcast %36 : i32 to vector<2x128xi32>
    %40 = arith.cmpi slt, %9, %39 : vector<2x128xi32>
    %41 = arith.andi %38, %40 : vector<2x128xi1>
    %cst_9 = arith.constant dense<true> : vector<2x128xi1>
    %42 = arith.xori %41, %cst_9 : vector<2x128xi1>
    %43 = arith.andi %27, %42 : vector<2x128xi1>
    %true_10 = arith.constant true
    %44 = vector.broadcast %true_10 : i1 to vector<1x128xi1>
    %c2_i32_11 = arith.constant 2 : i32
    %45 = arith.muli %arg0, %c2_i32_11 : i32
    %c0_i32_12 = arith.constant 0 : i32
    %46 = arith.addi %45, %c0_i32_12 : i32
    %47 = arith.index_cast %46 : i32 to index
    %48 = memref.load %arg4[%47] : memref<4xi32, #tpu.memory_space<smem>>
    %c2_i32_13 = arith.constant 2 : i32
    %49 = arith.muli %arg0, %c2_i32_13 : i32
    %c0_i32_14 = arith.constant 0 : i32
    %50 = arith.addi %49, %c0_i32_14 : i32
    %51 = arith.index_cast %50 : i32 to index
    %52 = memref.load %arg5[%51] : memref<4xi32, #tpu.memory_space<smem>>
    %53 = arith.addi %48, %52 : i32
    %54 = vector.broadcast %48 : i32 to vector<1x128xi32>
    %55 = arith.cmpi sge, %10, %54 : vector<1x128xi32>
    %56 = vector.broadcast %53 : i32 to vector<1x128xi32>
    %57 = arith.cmpi slt, %10, %56 : vector<1x128xi32>
    %58 = arith.andi %55, %57 : vector<1x128xi1>
    %cst_15 = arith.constant dense<true> : vector<1x128xi1>
    %59 = arith.xori %58, %cst_15 : vector<1x128xi1>
    %60 = arith.andi %44, %59 : vector<1x128xi1>
    %c2_i32_16 = arith.constant 2 : i32
    %61 = arith.muli %arg0, %c2_i32_16 : i32
    %c1_i32_17 = arith.constant 1 : i32
    %62 = arith.addi %61, %c1_i32_17 : i32
    %63 = arith.index_cast %62 : i32 to index
    %64 = memref.load %arg4[%63] : memref<4xi32, #tpu.memory_space<smem>>
    %c2_i32_18 = arith.constant 2 : i32
    %65 = arith.muli %arg0, %c2_i32_18 : i32
    %c1_i32_19 = arith.constant 1 : i32
    %66 = arith.addi %65, %c1_i32_19 : i32
    %67 = arith.index_cast %66 : i32 to index
    %68 = memref.load %arg5[%67] : memref<4xi32, #tpu.memory_space<smem>>
    %69 = arith.addi %64, %68 : i32
    %70 = vector.broadcast %64 : i32 to vector<1x128xi32>
    %71 = arith.cmpi sge, %10, %70 : vector<1x128xi32>
    %72 = vector.broadcast %69 : i32 to vector<1x128xi32>
    %73 = arith.cmpi slt, %10, %72 : vector<1x128xi32>
    %74 = arith.andi %71, %73 : vector<1x128xi1>
    %cst_20 = arith.constant dense<true> : vector<1x128xi1>
    %75 = arith.xori %74, %cst_20 : vector<1x128xi1>
    %76 = arith.andi %60, %75 : vector<1x128xi1>
    %c0_21 = arith.constant 0 : index
    %c0_22 = arith.constant 0 : index
    %c0_23 = arith.constant 0 : index
    %c0_24 = arith.constant 0 : index
    %77 = vector.load %arg6[%c0_21, %c0_22, %c0_23, %c0_24] : memref<1x4x2x128xf32, #tpu.memory_space<vmem>>, vector<1x4x2x128xf32>
    %78 = vector.shape_cast %77 : vector<1x4x2x128xf32> to vector<4x2x128xf32>
    %79 = vector.broadcast %76 : vector<1x128xi1> to vector<2x128xi1>
    %80 = arith.andi %43, %79 : vector<2x128xi1>
    %81 = arith.extui %80 : vector<2x128xi1> to vector<2x128xi32>
    %82 = arith.sitofp %81 : vector<2x128xi32> to vector<2x128xf32>
    %83 = vector.shape_cast %82 : vector<2x128xf32> to vector<1x2x128xf32>
    %84 = vector.broadcast %83 : vector<1x2x128xf32> to vector<4x2x128xf32>
    %85 = arith.mulf %78, %84 : vector<4x2x128xf32>
    %c0_25 = arith.constant 0 : index
    %c0_26 = arith.constant 0 : index
    %c0_27 = arith.constant 0 : index
    %c0_28 = arith.constant 0 : index
    %86 = vector.load %arg9[%c0_25, %c0_26, %c0_27, %c0_28] : memref<1x4x2x128xf32, #tpu.memory_space<vmem>>, vector<1x4x2x128xf32>
    %87 = vector.shape_cast %86 : vector<1x4x2x128xf32> to vector<4x2x128xf32>
    %88 = vector.shape_cast %85 : vector<4x2x128xf32> to vector<1x4x2x128xf32>
    tpu.vector_store %arg9[%c0_25, %c0_26, %c0_27, %c0_28], %88 {strides = array<i32>} : memref<1x4x2x128xf32, #tpu.memory_space<vmem>>, vector<1x4x2x128xf32>,
    return
  }
  func.func @transform_0(%arg0: i32, %arg1: i32, %arg2: memref<4xi32, #tpu.memory_space<smem>>, %arg3: memref<4xi32, #tpu.memory_space<smem>>, %arg4: memref<4xi32, #tpu.memory_space<smem>>, %arg5: memref<4xi32, #tpu.memory_space<smem>>) -> (i32, i32, i32, i32) {
    %c0_i32 = arith.constant 0 : i32
    %c0_i32_0 = arith.constant 0 : i32
    %c0_i32_1 = arith.constant 0 : i32
    return %arg0, %c0_i32, %arg1, %c0_i32_0 : i32, i32, i32, i32
  }
  func.func @transform_1(%arg0: i32, %arg1: i32, %arg2: memref<4xi32, #tpu.memory_space<smem>>, %arg3: memref<4xi32, #tpu.memory_space<smem>>, %arg4: memref<4xi32, #tpu.memory_space<smem>>, %arg5: memref<4xi32, #tpu.memory_space<smem>>) -> (i32, i32) {
    %c0_i32 = arith.constant 0 : i32
    %c0_i32_0 = arith.constant 0 : i32
    %c0_i32_1 = arith.constant 0 : i32
    return %c0_i32, %c0_i32_0 : i32, i32
  }
  func.func @transform_2(%arg0: i32, %arg1: i32, %arg2: memref<4xi32, #tpu.memory_space<smem>>, %arg3: memref<4xi32, #tpu.memory_space<smem>>, %arg4: memref<4xi32, #tpu.memory_space<smem>>, %arg5: memref<4xi32, #tpu.memory_space<smem>>) -> (i32, i32) {
    %c0_i32 = arith.constant 0 : i32
    %c0_i32_0 = arith.constant 0 : i32
    %c0_i32_1 = arith.constant 0 : i32
    return %c0_i32, %c0_i32_0 : i32, i32
  }
  func.func @transform_3(%arg0: i32, %arg1: i32, %arg2: memref<4xi32, #tpu.memory_space<smem>>, %arg3: memref<4xi32, #tpu.memory_space<smem>>, %arg4: memref<4xi32, #tpu.memory_space<smem>>, %arg5: memref<4xi32, #tpu.memory_space<smem>>) -> (i32, i32, i32, i32) {
    %c0_i32 = arith.constant 0 : i32
    %c0_i32_0 = arith.constant 0 : i32
    %c0_i32_1 = arith.constant 0 : i32
    return %arg0, %c0_i32, %arg1, %c0_i32_0 : i32, i32, i32, i32
  }
}

</mosaic_0001>

<llo_original>
// kernel: tpu_custom_call.1
$region0: #{tpu_custom_call.1}
  #allocation0 [shape = 'u32[]', space=smem, size = 0x4, offset = 0x4, fixed_abs, tag = 'smem constant byte address 0x4 - core index']
  #allocation1 [shape = 'u32[144,128]{1,0:T(1,128)}', space=vmem, size = 0x12000, scoped, tag = 'internal scratch']
  #allocation2 [shape = 's32[1]{0}', space=sflag, size = 0x4, scoped, tag = 'scoped memory for tpu_custom_call.1']
  #allocation3 [shape = 'u8[512]{0}', space=smem, size = 0x200, scoped, tag = 'prefetched SMEM operand 0']
  #allocation4 [shape = 'u8[512]{0}', space=smem, size = 0x200, scoped, tag = 'prefetched SMEM operand 1']
  #allocation5 [shape = 'u8[512]{0}', space=smem, size = 0x200, scoped, tag = 'prefetched SMEM operand 2']
  #allocation6 [shape = 'u8[512]{0}', space=smem, size = 0x200, scoped, tag = 'prefetched SMEM operand 3']
  %s0 = inlined_call_operand.hbm [shape: s32[4], index: 0, kind: input, shape index: {}]
  %s1 = inlined_call_operand.vmem [shape: s32[4], index: 1, kind: input, shape index: {}]
  %s2 = inlined_call_operand.vmem [shape: s32[4], index: 2, kind: input, shape index: {}]
  %s3 = inlined_call_operand.vmem [shape: s32[4], index: 3, kind: input, shape index: {}]
  %s4 = inlined_call_operand.hbm [shape: f32[2,4,2,128], index: 4, kind: input, shape index: {}]
  %s5 = inlined_call_operand.vmem [shape: s32[1,128], index: 5, kind: input, shape index: {}]
  %s6 = inlined_call_operand.vmem [shape: s32[1,128], index: 6, kind: input, shape index: {}]
  %s7 = inlined_call_operand.hbm [shape: f32[2,4,2,128], index: 7, kind: output, shape index: {}]
  %s8 = sld [smem:[#allocation0]]
  $region49: #{tpu_custom_call.1} parent=0
    _
  %s10 = ssub.s32 1, %s8
  %s11 = scalar_select 0, %s10, %s8
  %13 = dma.hbm_to_smem %s0, 16, [#allocation3], [#allocation2]
  %s14 = sshll.u32 %s1, 4
  %s15 = int_to_ptr.vmem [resolvable:$true] %s14
  %17 = dma.vmem_to_smem %s15, 16, [#allocation4], [#allocation2]
  %s18 = sshll.u32 %s2, 4
  %s19 = int_to_ptr.vmem [resolvable:$true] %s18
  %21 = dma.vmem_to_smem %s19, 16, [#allocation5], [#allocation2]
  %s22 = sshll.u32 %s3, 4
  %s23 = int_to_ptr.vmem [resolvable:$true] %s22
  %25 = dma.vmem_to_smem %s23, 16, [#allocation6], [#allocation2]
  %26 = dma.done [#allocation2], 64
  %27 = sfence
  $region1: #{tpu_custom_call.1} parent=0
    #allocation7 [shape = 'u8[8192]{0}', space=vmem, size = 0x2000, scoped, tag = 'input window, operand 4']
    #allocation8 [shape = 's32[2]{0}', space=sflag, size = 0x8, scoped, tag = 'scoped memory for tpu_custom_call.1']
    #allocation9 [shape = 's32[2]{0}', space=sflag, size = 0x8, scoped, tag = 'scoped memory for tpu_custom_call.1']
    #allocation10 [shape = 'u8[8192]{0}', space=vmem, size = 0x2000, scoped, tag = 'output window, operand 0']
    %28 = vsyncpa [#allocation8], 0
    %s29 = scalar_lea.sflag [#allocation8], 1
    %30 = vsyncpa %s29, 0
    %31 = vsyncpa [#allocation9], 0
    %s32 = scalar_lea.sflag [#allocation9], 1
    %33 = vsyncpa %s32, 0
    loop: start=0, step=1, limit=4
    $region2: #{tpu_custom_call.1} parent=1 // loop_pre_header
      _
    $region3: #{tpu_custom_call.1} parent=1 // loop_header
      %s35 = sphi 0, %s39
      %p36 = scmp.ge.s32.totalorder %s35, 4
      %s42 = sphi 0, %s54
      %s43 = sphi 0, %s50
      %s44 = sphi 0, %s42
      %s45 = sphi 0, %s43
      %s46 = sphi 0, %s44
      %s47 = sphi 0, %s45
      %s59 = sphi 0, %s61
      %s62 = sphi 0, %s59
      %s63 = sphi 0, %s62
      %s79 = sphi 0, %s63
      %s83 = sphi 0, %s83
      %s85 = sphi 0, %s83
      %s86 = sphi 0, %s85
      %s100 = sphi 0, %s86
      %s104 = sphi 0, %s104
      %s106 = sphi 0, %s104
      %s107 = sphi 0, %s106
      %s121 = sphi 0, %s107
      %s129 = sphi 0, %s131
      %s132 = sphi 0, %s129
      %s133 = sphi 0, %s132
      %s149 = sphi 0, %s133
    $region4: #{tpu_custom_call.1} parent=1 // loop_header_branch
      %38 = sbr.rel (%p36) target = $region8
    $region5: #{tpu_custom_call.1} parent=1 // loop_body
      %s40 = ssub.s32 %s35, 1
      %s41 = ssub.s32 %s35, 2
      %s48 = sadd.s32 1, %s43
      %p49 = scmp.ge.s32.totalorder %s48, 1
      %s50 = scalar_select %p49, 0, %s48
      %s51 = sadd.s32 1, %s42
      %s52 = scalar_select %p49, %s51, %s42
      %p53 = scmp.ge.s32.totalorder %s52, 2
      %s54 = scalar_select %p53, 0, %s52
      %s55 = ssub.s32 %s42, %s54
      %s56 = ssub.s32 %s43, %s50
      %s57 = sor.u32 %s55, %s56
      %p58 = scmp.eq.s32.totalorder %s57, 0
      %s60 = sadd.s32 %s59, 1
      %s61 = scalar_select %p58, %s59, %s60
      %p64 = pneg %p58
      %p65 = scmp.eq.s32.totalorder %s35, 1
      %p66 = por %p64, %p65
      %p67 = scmp.ne.s32.totalorder %s59, %s62
      %p68 = scmp.eq.s32.totalorder %s35, 0
      %p69 = por %p67, %p68
      %p70 = scmp.ne.s32.totalorder %s59, %s62
      %p71 = scmp.eq.s32.totalorder %s40, 1
      %p72 = por %p70, %p71
      %p73 = scmp.ne.s32.totalorder %s62, %s63
      %p74 = scmp.eq.s32.totalorder %s40, 0
      %p75 = por %p73, %p74
      %p76 = scmp.ne.s32.totalorder %s62, %s63
      %p77 = scmp.eq.s32.totalorder %s41, 1
      %p78 = por %p76, %p77
      %p80 = scmp.ne.s32.totalorder %s63, %s79
      %p81 = scmp.eq.s32.totalorder %s41, 0
      %p82 = por %p80, %p81
      %s84 = sadd.s32 %s83, 1
      %p87 = scmp.eq.s32.totalorder %s35, 1
      %p88 = scmp.ne.s32.totalorder %s83, %s85
      %p89 = scmp.eq.s32.totalorder %s35, 0
      %p90 = por %p88, %p89
      %p91 = scmp.ne.s32.totalorder %s83, %s85
      %p92 = scmp.eq.s32.totalorder %s40, 1
      %p93 = por %p91, %p92
      %p94 = scmp.ne.s32.totalorder %s85, %s86
      %p95 = scmp.eq.s32.totalorder %s40, 0
      %p96 = por %p94, %p95
      %p97 = scmp.ne.s32.totalorder %s85, %s86
      %p98 = scmp.eq.s32.totalorder %s41, 1
      %p99 = por %p97, %p98
      %p101 = scmp.ne.s32.totalorder %s86, %s100
      %p102 = scmp.eq.s32.totalorder %s41, 0
      %p103 = por %p101, %p102
      %s105 = sadd.s32 %s104, 1
      %p108 = scmp.eq.s32.totalorder %s35, 1
      %p109 = scmp.ne.s32.totalorder %s104, %s106
      %p110 = scmp.eq.s32.totalorder %s35, 0
      %p111 = por %p109, %p110
      %p112 = scmp.ne.s32.totalorder %s104, %s106
      %p113 = scmp.eq.s32.totalorder %s40, 1
      %p114 = por %p112, %p113
      %p115 = scmp.ne.s32.totalorder %s106, %s107
      %p116 = scmp.eq.s32.totalorder %s40, 0
      %p117 = por %p115, %p116
      %p118 = scmp.ne.s32.totalorder %s106, %s107
      %p119 = scmp.eq.s32.totalorder %s41, 1
      %p120 = por %p118, %p119
      %p122 = scmp.ne.s32.totalorder %s107, %s121
      %p123 = scmp.eq.s32.totalorder %s41, 0
      %p124 = por %p122, %p123
      %s125 = ssub.s32 %s42, %s54
      %s126 = ssub.s32 %s43, %s50
      %s127 = sor.u32 %s125, %s126
      %p128 = scmp.eq.s32.totalorder %s127, 0
      %s130 = sadd.s32 %s129, 1
      %s131 = scalar_select %p128, %s129, %s130
      %p134 = pneg %p128
      %p135 = scmp.eq.s32.totalorder %s35, 1
      %p136 = por %p134, %p135
      %p137 = scmp.ne.s32.totalorder %s129, %s132
      %p138 = scmp.eq.s32.totalorder %s35, 0
      %p139 = por %p137, %p138
      %p140 = scmp.ne.s32.totalorder %s129, %s132
      %p141 = scmp.eq.s32.totalorder %s40, 1
      %p142 = por %p140, %p141
      %p143 = scmp.ne.s32.totalorder %s132, %s133
      %p144 = scmp.eq.s32.totalorder %s40, 0
      %p145 = por %p143, %p144
      %p146 = scmp.ne.s32.totalorder %s132, %s133
      %p147 = scmp.eq.s32.totalorder %s41, 1
      %p148 = por %p146, %p147
      %p150 = scmp.ne.s32.totalorder %s133, %s149
      %p151 = scmp.eq.s32.totalorder %s41, 0
      %p152 = por %p150, %p151
      %p153 = scmp.le.s32.totalorder 1, %s35
      %p154 = scmp.lt.s32.totalorder %s35, 3
      %p155 = pnand %p153, %p154
      %p156 = pneg %p155
      // Predicated region
      $region9: #{tpu_custom_call.1} parent=5 // pred_check
        _
      $region10: #{tpu_custom_call.1} parent=5 // pred_check_branch
        %158 = sbr.rel (%p155) target = $region12
      $region11: #{tpu_custom_call.1} parent=5 // pred_region
        %s159 = ssub.s32 %s35, 1
        // Predicated region
        $region13: #{tpu_custom_call.1} parent=11 // pred_check
          %p160 = pneg %p96
        $region14: #{tpu_custom_call.1} parent=11 // pred_check_branch
          %162 = sbr.rel (%p160) target = $region16
        $region15: #{tpu_custom_call.1} parent=11 // pred_region
          _
        $region16: #{tpu_custom_call.1} parent=11 // pred_fallthru
          _
        // Predicated region
        $region17: #{tpu_custom_call.1} parent=11 // pred_check
          %p163 = pneg %p117
        $region18: #{tpu_custom_call.1} parent=11 // pred_check_branch
          %165 = sbr.rel (%p163) target = $region20
        $region19: #{tpu_custom_call.1} parent=11 // pred_region
          _
        $region20: #{tpu_custom_call.1} parent=11 // pred_fallthru
          _
      $region12: #{tpu_custom_call.1} parent=5 // pred_fallthru
        _
      %p166 = scmp.lt.s32.totalorder %s35, 2
      // Predicated region
      $region21: #{tpu_custom_call.1} parent=5 // pred_check
        %p167 = pneg %p166
      $region22: #{tpu_custom_call.1} parent=5 // pred_check_branch
        %169 = sbr.rel (%p167) target = $region24
      $region23: #{tpu_custom_call.1} parent=5 // pred_region
        // Predicated region
        $region25: #{tpu_custom_call.1} parent=23 // pred_check
          %p170 = pneg %p69
        $region26: #{tpu_custom_call.1} parent=23 // pred_check_branch
          %172 = sbr.rel (%p170) target = $region28
        $region27: #{tpu_custom_call.1} parent=23 // pred_region
          %s173 = sand.u32 %s59, 1
          %s174 = scalar_lea.sflag [#allocation8], %s173
          %s175 = sand.u32 %s59, 1
          %s176 = smul.addr %s175, 8
          %s177 = scalar_lea.vmem [#allocation7], %s176
          %s179 = ssub.s32 128, 128
          %180 = vsyncadd %s174, %s179
          %s181 = smul.addr %s42, 4
          %s182 = sadd.s32 %s43, %s181
          %s183 = smul.addr %s182, 32
          %s184 = scalar_lea.hbm %s4, %s183
          %s185 = sshll.u32 %s177, 4
          %s186 = int_to_ptr.vmem [resolvable:$true] %s185
          %191 = dma.hbm_to_vmem [thread:$0]  %s184, 128, %s186, %s174, 32, 32, 2
        $region28: #{tpu_custom_call.1} parent=23 // pred_fallthru
          _
      $region24: #{tpu_custom_call.1} parent=5 // pred_fallthru
        _
      %p192 = scmp.le.s32.totalorder 1, %s35
      %p193 = scmp.lt.s32.totalorder %s35, 3
      %p194 = pnand %p192, %p193
      %p195 = pneg %p194
      // Predicated region
      $region29: #{tpu_custom_call.1} parent=5 // pred_check
        _
      $region30: #{tpu_custom_call.1} parent=5 // pred_check_branch
        %197 = sbr.rel (%p194) target = $region32
      $region31: #{tpu_custom_call.1} parent=5 // pred_region
        %s198 = ssub.s32 %s35, 1
        %s199 = sand.u32 %s62, 1
        %s200 = scalar_lea.sflag [#allocation8], %s199
        %s201 = sand.u32 %s62, 1
        %s202 = smul.addr %s201, 8
        %s203 = scalar_lea.vmem [#allocation7], %s202
        // Predicated region
        $region33: #{tpu_custom_call.1} parent=31 // pred_check
          %p204 = pneg %p75
        $region34: #{tpu_custom_call.1} parent=31 // pred_check_branch
          %206 = sbr.rel (%p204) target = $region36
        $region35: #{tpu_custom_call.1} parent=31 // pred_region
          %207 = dma.done %s200, 128
        $region36: #{tpu_custom_call.1} parent=31 // pred_fallthru
          _
        %s208 = sand.u32 %s62, 1
        %s209 = scalar_lea.sflag [#allocation8], %s208
        %s210 = sand.u32 %s62, 1
        %s211 = smul.addr %s210, 8
        %s212 = scalar_lea.vmem [#allocation7], %s211
        %p213 = pneg %p75
        %p214 = pneg %p72
        %p215 = pneg %p96
        %p216 = pneg %p93
        %p217 = pneg %p117
        %p218 = pneg %p114
        %p219 = pneg %p145
        %p220 = pneg %p142
        %s221 = sand.u32 %s132, 1
        %s222 = scalar_lea.sflag [#allocation9], %s221
        %s223 = sand.u32 %s132, 1
        %s224 = smul.addr %s223, 8
        %s225 = scalar_lea.vmem [#allocation10], %s224
        %v226 = vlaneseq
        %v227 = vshrl.u32 %v226, 7
        %s228 = smul.u32 %s45, 2
        %v229 = vstv %s228
        %v230 = vadd.s32 %v229, %v227
        %v231 = vmul.u32 %v230, 8
        %v232 = vld [vmem:[%s5] sm:$0x1]
        %v233 = vlaneseq
        %v234 = vshrl.u32 %v233, 7
        %v235 = vsub.s32 0, %v234
        %v236 = vrot.slane %v232, %v235
        %v237 = vadd.s32 %v231, %v236
        %v238 = vld [vmem:[%s6] sm:$0x1]
        %s239 = smul.u32 %s44, 2
        %s240 = sld [smem:[#allocation3 + %s239]]
        %s241 = sld [smem:[#allocation4 + %s239]]
        %s242 = sadd.s32 %s240, %s241
        %v243 = vstv %s240
        %vm244 = vcmp.ge.s32.totalorder %v237, %v243
        %v245 = vstv %s242
        %vm246 = vcmp.lt.s32.totalorder %v237, %v245
        %vm247 = vmand %vm244, %vm246
        %vm248 = vmxor %vm247, 1
        %s249 = sadd.s32 %s239, 1
        %s250 = sld [smem:[#allocation3 + %s249]]
        %s251 = sld [smem:[#allocation4 + %s249]]
        %s252 = sadd.s32 %s250, %s251
        %v253 = vstv %s250
        %vm254 = vcmp.ge.s32.totalorder %v237, %v253
        %v255 = vstv %s252
        %vm256 = vcmp.lt.s32.totalorder %v237, %v255
        %vm257 = vmand %vm254, %vm256
        %vm258 = vmxor %vm257, 1
        %vm259 = vmand %vm248, %vm258
        %s260 = sld [smem:[#allocation5 + %s239]]
        %s261 = sld [smem:[#allocation6 + %s239]]
        %s262 = sadd.s32 %s260, %s261
        %v263 = vstv %s260
        %vm264 = vcmp.ge.s32.totalorder %v238, %v263
        %v265 = vstv %s262
        %vm266 = vcmp.lt.s32.totalorder %v238, %v265
        %vm267 = vmand %vm264, %vm266
        %vm268 = vmxor %vm267, 1
        %s269 = sld [smem:[#allocation5 + %s249]]
        %s270 = sld [smem:[#allocation6 + %s249]]
        %s271 = sadd.s32 %s269, %s270
        %v272 = vstv %s269
        %vm273 = vcmp.ge.s32.totalorder %v238, %v272
        %v274 = vstv %s271
        %vm275 = vcmp.lt.s32.totalorder %v238, %v274
        %vm276 = vmand %vm273, %vm275
        %vm277 = vmxor %vm276, 1
        %vm278 = vmand %vm268, %vm277
        %v279 = vld [vmem:[%s203] sm:$0x3]
        %v280 = vld [vmem:[%s203 + $0x2] sm:$0x3]
        %v281 = vld [vmem:[%s203 + $0x4] sm:$0x3]
        %v282 = vld [vmem:[%s203 + $0x6] sm:$0x3]
        %v283 = vsel %vm278, 1, 0
        %v284 = vlaneseq
        %v285 = vshrl.u32 %v284, 7
        %v286 = vsub.s32 0, %v285
        %v287 = vrot.slane %v283, %v286
        %vm288 = vcmp.eq.s32.totalorder %v287, 1
        %vm289 = vmand %vm259, %vm288
        %v290 = vsel %vm289, 1, 0
        %v291 = vcvt.s32.f32 %v290
        %v292 = vmul.f32 %v279, %v291
        %v293 = vmul.f32 %v280, %v291
        %v294 = vmul.f32 %v281, %v291
        %v295 = vmul.f32 %v282, %v291
        %296 = vst [vmem:[%s225] sm:$0x3] %v292
        %297 = vst [vmem:[%s225 + $0x2] sm:$0x3] %v293
        %298 = vst [vmem:[%s225 + $0x4] sm:$0x3] %v294
        %299 = vst [vmem:[%s225 + $0x6] sm:$0x3] %v295
        %s300 = sand.u32 %s132, 1
        %s301 = scalar_lea.sflag [#allocation9], %s300
        %s302 = sand.u32 %s132, 1
        %s303 = smul.addr %s302, 8
        %s304 = scalar_lea.vmem [#allocation10], %s303
        // Predicated region
        $region37: #{tpu_custom_call.1} parent=31 // pred_check
          %p305 = pneg %p142
        $region38: #{tpu_custom_call.1} parent=31 // pred_check_branch
          %307 = sbr.rel (%p305) target = $region40
        $region39: #{tpu_custom_call.1} parent=31 // pred_region
          %s309 = ssub.s32 128, 128
          %310 = vsyncadd %s301, %s309
          %s311 = smul.addr %s44, 4
          %s312 = sadd.s32 %s45, %s311
          %s313 = smul.addr %s312, 32
          %s314 = scalar_lea.hbm %s7, %s313
          %s315 = sshll.u32 %s304, 4
          %s316 = int_to_ptr.vmem [resolvable:$true] %s315
          %321 = dma.vmem_to_hbm [thread:$0]  %s316, 128, %s314, %s301, 32, 32, 2
        $region40: #{tpu_custom_call.1} parent=31 // pred_fallthru
          _
      $region32: #{tpu_custom_call.1} parent=5 // pred_fallthru
        _
      %p322 = scmp.le.s32.totalorder 2, %s35
      // Predicated region
      $region41: #{tpu_custom_call.1} parent=5 // pred_check
        %p323 = pneg %p322
      $region42: #{tpu_custom_call.1} parent=5 // pred_check_branch
        %325 = sbr.rel (%p323) target = $region44
      $region43: #{tpu_custom_call.1} parent=5 // pred_region
        %s326 = ssub.s32 %s35, 2
        // Predicated region
        $region45: #{tpu_custom_call.1} parent=43 // pred_check
          %p327 = pneg %p148
        $region46: #{tpu_custom_call.1} parent=43 // pred_check_branch
          %329 = sbr.rel (%p327) target = $region48
        $region47: #{tpu_custom_call.1} parent=43 // pred_region
          %s330 = sand.u32 %s133, 1
          %s331 = scalar_lea.sflag [#allocation9], %s330
          %s332 = sand.u32 %s133, 1
          %s333 = smul.addr %s332, 8
          %s334 = scalar_lea.vmem [#allocation10], %s333
          %335 = dma.done %s331, 128
        $region48: #{tpu_custom_call.1} parent=43 // pred_fallthru
          _
      $region44: #{tpu_custom_call.1} parent=5 // pred_fallthru
        _
    $region6: #{tpu_custom_call.1} parent=1 // loop_footer
      %s39 = sadd.s32 1, %s35
    $region7: #{tpu_custom_call.1} parent=1 // loop_footer_branch
      %34 = sbr.rel target = $region3
    $region8: #{tpu_custom_call.1} parent=1 // loop_exit
      _
    %336 = vsyncpa [#allocation8], 1
    %s337 = scalar_lea.sflag [#allocation8], 1
    %338 = vsyncpa %s337, 1
    %339 = vsyncpa [#allocation9], 1
    %s340 = scalar_lea.sflag [#allocation9], 1
    %341 = vsyncpa %s340, 1

</llo_original>
